<compile_context>
chip_gen: v7x
topology: tpu7x:2x2x1
jax: 0.10.0
libtpu: 0.0.40
codegen_flags: <defaults>
</compile_context>

<pallas_src>
import functools

import jax
import jax.numpy as jnp
from jax.experimental import pallas as pl
from jax.experimental.pallas import tpu as pltpu

_LANE = 128
_TARGET_BLOCK_BYTES = 2 << 20   # ~2 MiB f32: measured HBM-efficiency plateau
_MAX_BLOCK_BYTES = 3 << 20      # keeps the double-buffered working set small
_SMALL_PATH_BYTES = 4 << 20     # f32 bytes of x below which the fused path runs
_VMEM_CAP = 40 << 20            # stay clear of v7x's 64 MiB physical VMEM


def _cdiv(a, b):
    return -(-a // b)


# ---------------------------------------------------------------------------
# Path (a): whole activation resident in VMEM -> fused stats + norm + ReLU
# ---------------------------------------------------------------------------
def _fused_small_kernel(x_ref, gamma_ref, beta_ref, o_ref, *, m, eps):
    x = x_ref[...].astype(jnp.float32)                                # (N,C,HW)
    inv_m = 1.0 / m
    mean = jnp.sum(jnp.sum(x, axis=0), axis=-1, keepdims=True) * inv_m  # (C,1)
    d = x - mean[None]                            # two-pass (accurate) variance
    var = jnp.sum(jnp.sum(d * d, axis=0), axis=-1, keepdims=True) * inv_m
    inv_std = jax.lax.rsqrt(var + eps)                                # (C,1)
    scale = gamma_ref[...] * inv_std[None]                            # (1,C,1)
    shift = beta_ref[...] - mean[None] * scale
    o_ref[...] = jnp.maximum(x * scale + shift, 0.0).astype(o_ref.dtype)


# ---------------------------------------------------------------------------
# Path (b), Pass A: per-split, per-lane partial sums / sums-of-squares
# ---------------------------------------------------------------------------
def _stats_kernel(x_ref, psum_ref, psq_ref, *, hw, hw_tile,
                  hw_blocks_per_split, split_hw):
    ni = pl.program_id(1)
    hi = pl.program_id(2)

    @pl.when(jnp.logical_and(ni == 0, hi == 0))
    def _init():                           # first step of *this split's* blocks
        psum_ref[...] = jnp.zeros_like(psum_ref)
        psq_ref[...] = jnp.zeros_like(psq_ref)

    x = x_ref[...].astype(jnp.float32)                       # (n_blk,C,hw_tile)

    if hw % hw_tile != 0:
        # cdiv grid over HW: zero out the padded lanes of the last block.
        if split_hw:
            hi_g = pl.program_id(0) * hw_blocks_per_split + hi
        else:
            hi_g = hi
        valid = hw - hi_g * hw_tile
        lane = jax.lax.broadcasted_iota(jnp.int32, (1, 1, hw_tile), 2)
        x = jnp.where(lane < valid, x, 0.0)

    # Deferred cross-lane reduction: accumulate (C,128) lane partials with
    # plain VPU adds (static lane slices are free); the single XLU reduce
    # happens once, outside the kernel.
    n_full = hw_tile // _LANE
    rem = hw_tile - n_full * _LANE
    if n_full:
        ps = psum_ref[...]
        pq = psq_ref[...]
        for j in range(n_full):
            ch = x[:, :, j * _LANE:(j + 1) * _LANE]           # (n_blk,C,128)
            ps = ps + jnp.sum(ch, axis=0)
            pq = pq + jnp.sum(ch * ch, axis=0)
        psum_ref[...] = ps
        psq_ref[...] = pq
    if rem:                                                   # only when hw<128
        ch = x[:, :, n_full * _LANE:]
        psum_ref[:, :rem] += jnp.sum(ch, axis=0)
        psq_ref[:, :rem] += jnp.sum(ch * ch, axis=0)


# ---------------------------------------------------------------------------
# Path (b), Pass B: y = max(x*scale + shift, 0), fully parallel
# ---------------------------------------------------------------------------
def _apply_kernel(scale_ref, shift_ref, x_ref, o_ref):
    x = x_ref[...].astype(jnp.float32)                        # (n_blk,C,hw_tile)
    y = x * scale_ref[...] + shift_ref[...]                   # (1,C,1) broadcast
    o_ref[...] = jnp.maximum(y, 0.0).astype(o_ref.dtype)


def _choose_tiles(n, c, hw):
    """Pick (n_blk, hw_tile) so block f32 bytes land near the ~2 MiB plateau."""
    if hw <= _LANE:
        hw_tile = hw                       # full extent; single (masked) column
    else:
        chunk_bytes = c * _LANE * 4
        max_chunks = hw // _LANE           # keep hw_tile <= hw (cdiv grid + mask)
        want = max(1, _TARGET_BLOCK_BYTES // chunk_bytes)
        fit = max(1, _MAX_BLOCK_BYTES // chunk_bytes)
        hw_tile = min(max_chunks, want, fit) * _LANE
    blk_bytes = c * hw_tile * 4
    n_blk = 1
    for d in range(1, n + 1):              # fold batch to reach the byte floor
        if n % d:
            continue
        if d * blk_bytes > _MAX_BLOCK_BYTES:
            break
        n_blk = d
        if d * blk_bytes >= _TARGET_BLOCK_BYTES:
            break
    return n_blk, hw_tile


def norm_relu(x_nchw, gamma, beta, eps=1e-5):
    """Training-mode BatchNorm2d + ReLU.  x: (N,C,H,W); gamma/beta: (C,)."""
    n, c, h, w = x_nchw.shape
    hw = h * w
    m = float(n * hw)

    x3 = x_nchw.reshape(n, c, hw)                      # free contiguous reshape
    gamma3 = gamma.reshape(1, c, 1).astype(jnp.float32)
    beta3 = beta.reshape(1, c, 1).astype(jnp.float32)

    itemsize = x_nchw.dtype.itemsize
    x_bytes = n * c * hw * itemsize
    f32_bytes = n * c * hw * 4

    # ---- Path (a): fused single-read kernel for activations that fit VMEM ----
    if f32_bytes <= _SMALL_PATH_BYTES:
        vmem_limit = int(min(_VMEM_CAP, 4 * x_bytes + 4 * f32_bytes + (2 << 20)))
        out3 = pl.pallas_call(
            functools.partial(_fused_small_kernel, m=m, eps=float(eps)),
            out_shape=jax.ShapeDtypeStruct((n, c, hw), x_nchw.dtype),
            grid_spec=pltpu.PrefetchScalarGridSpec(
                num_scalar_prefetch=0,
                grid=(1,),
                in_specs=[
                    pl.BlockSpec((n, c, hw), lambda i: (0, 0, 0)),
                    pl.BlockSpec((1, c, 1), lambda i: (0, 0, 0)),
                    pl.BlockSpec((1, c, 1), lambda i: (0, 0, 0)),
                ],
                out_specs=pl.BlockSpec((n, c, hw), lambda i: (0, 0, 0)),
            ),
            compiler_params=pltpu.CompilerParams(
                dimension_semantics=("arbitrary",),
                vmem_limit_bytes=vmem_limit,
            ),
        )(x3, gamma3, beta3)
        return out3.reshape(n, c, h, w)

    # ---- Path (b): tiled, pipelined two-pass kernel ----
    n_blk, hw_tile = _choose_tiles(n, c, hw)
    nb_total = n // n_blk
    n_hwb = _cdiv(hw, hw_tile)

    blk_in = n_blk * c * hw_tile * itemsize
    blk_f32 = n_blk * c * hw_tile * 4
    # in (2 bufs) + out (2 bufs) + f32 temps + slack; sized from the block.
    vmem_limit = int(min(_VMEM_CAP,
                         max(8 << 20, 4 * blk_in + 4 * blk_f32 + (4 << 20))))

    # Megacore split for Pass A: leading "parallel" axis, each split owns its
    # own partial-sum blocks, so it is race-free whether or not it is sharded.
    # (On v7x this leading axis can be marked pltpu.CORE_PARALLEL instead.)
    if nb_total % 2 == 0 and nb_total >= 2:
        n_splits, nb_in, hw_in, split_hw = 2, nb_total // 2, n_hwb, False
        x_map = lambda s, ni, hi: (s * nb_in + ni, 0, hi)
    elif n_hwb % 2 == 0 and n_hwb >= 2:
        n_splits, nb_in, hw_in, split_hw = 2, nb_total, n_hwb // 2, True
        x_map = lambda s, ni, hi: (ni, 0, s * hw_in + hi)
    else:
        n_splits, nb_in, hw_in, split_hw = 1, nb_total, n_hwb, False
        x_map = lambda s, ni, hi: (ni, 0, hi)

    psum, psq = pl.pallas_call(
        functools.partial(_stats_kernel, hw=hw, hw_tile=hw_tile,
                          hw_blocks_per_split=hw_in, split_hw=split_hw),
        out_shape=(jax.ShapeDtypeStruct((n_splits, c, _LANE), jnp.float32),
                   jax.ShapeDtypeStruct((n_splits, c, _LANE), jnp.float32)),
        grid_spec=pltpu.PrefetchScalarGridSpec(
            num_scalar_prefetch=0,
            grid=(n_splits, nb_in, hw_in),
            in_specs=[pl.BlockSpec((n_blk, c, hw_tile), x_map)],
            out_specs=(
                pl.BlockSpec((None, c, _LANE), lambda s, ni, hi: (s, 0, 0)),
                pl.BlockSpec((None, c, _LANE), lambda s, ni, hi: (s, 0, 0)),
            ),
        ),
        compiler_params=pltpu.CompilerParams(
            dimension_semantics=("parallel", "arbitrary", "arbitrary"),
            vmem_limit_bytes=vmem_limit,
        ),
    )(x3)

    # Tiny per-channel finalize in plain XLA (O(C) work).
    total = jnp.sum(psum, axis=(0, 2))
    totsq = jnp.sum(psq, axis=(0, 2))
    mean = total / m
    # One-pass variance (f32 sum/sumsq with per-lane + per-split partials);
    # clamp tiny negative round-off before rsqrt.  For extreme |mean|/std a
    # Welford merge would be more accurate -- acceptable for BN activations.
    var = jnp.maximum(totsq / m - mean * mean, 0.0)
    scale_c = gamma.astype(jnp.float32).reshape(c) * jax.lax.rsqrt(var + eps)
    shift_c = beta.astype(jnp.float32).reshape(c) - mean * scale_c
    scale3 = scale_c.reshape(1, c, 1)
    shift3 = shift_c.reshape(1, c, 1)

    out3 = pl.pallas_call(
        _apply_kernel,
        out_shape=jax.ShapeDtypeStruct((n, c, hw), x_nchw.dtype),
        grid_spec=pltpu.PrefetchScalarGridSpec(
            num_scalar_prefetch=0,
            grid=(nb_total, n_hwb),
            in_specs=[
                pl.BlockSpec((1, c, 1), lambda ni, hi: (0, 0, 0)),
                pl.BlockSpec((1, c, 1), lambda ni, hi: (0, 0, 0)),
                pl.BlockSpec((n_blk, c, hw_tile), lambda ni, hi: (ni, 0, hi)),
            ],
            out_specs=pl.BlockSpec((n_blk, c, hw_tile),
                                   lambda ni, hi: (ni, 0, hi)),
        ),
        compiler_params=pltpu.CompilerParams(
            dimension_semantics=("parallel", "parallel"),
            vmem_limit_bytes=vmem_limit,
        ),
    )(scale3, shift3, x3)

    return out3.reshape(n, c, h, w)


def _reference(x, gamma, beta, eps=1e-5):
    """Pure-JAX train-mode BatchNorm2d (biased var) + ReLU."""
    xf = x.astype(jnp.float32)
    mean = jnp.mean(xf, axis=(0, 2, 3), keepdims=True)
    var = jnp.var(xf, axis=(0, 2, 3), keepdims=True)
    y = (xf - mean) * jax.lax.rsqrt(var + eps)
    y = y * gamma.reshape(1, -1, 1, 1) + beta.reshape(1, -1, 1, 1)
    return jnp.maximum(y, 0.0).astype(x.dtype)


if __name__ == "__main__":
    key = jax.random.PRNGKey(0)

    def check(k, shape, dtype, tol, default_affine=True):
        n_, c_, _, _ = shape
        kx, kg, kb = jax.random.split(k, 3)
        x = jax.random.normal(kx, shape, dtype=dtype)
        if default_affine:
            gamma = jnp.ones((c_,), jnp.float32)      # PyTorch default init
            beta = jnp.zeros((c_,), jnp.float32)
        else:
            gamma = jax.random.normal(kg, (c_,), jnp.float32)
            beta = jax.random.normal(kb, (c_,), jnp.float32)
        out = norm_relu(x, gamma, beta)
        jax.block_until_ready(out)
        ref = _reference(x, gamma, beta)
        assert out.shape == x.shape and out.dtype == x.dtype
        err = jnp.max(jnp.abs(out.astype(jnp.float32) - ref.astype(jnp.float32)))
        assert float(err) < tol, (shape, str(dtype), float(err))

    k0, k1, k2, k3 = jax.random.split(key, 4)
    # Primary case from the module spec (fresh BatchNorm2d: gamma=1, beta=0).
    check(k0, (2, 4, 16, 16), jnp.float32, 1e-4)
    # Fused-VMEM path: bf16 input, non-default affine parameters.
    check(k1, (2, 16, 32, 32), jnp.bfloat16, 1e-1, default_affine=False)
    # Streaming two-pass path (HW a multiple of 128, batch-folded blocks).
    check(k2, (4, 32, 96, 96), jnp.float32, 1e-3, default_affine=False)
    # Streaming path with ragged HW (masked edge block) + megacore split.
    check(k3, (8, 48, 56, 56), jnp.float32, 1e-3, default_affine=False)

    print("KERNEL_OK")
</pallas_src>

<mosaic_0001>
module attributes {stable_mosaic.version = 11 : i64} {
  func.func @_fused_small_kernel(%arg0: i32, %arg1: memref<2x4x256xf32, #tpu.memory_space<vmem>>, %arg2: memref<1x4x1xf32, #tpu.memory_space<vmem>>, %arg3: memref<1x4x1xf32, #tpu.memory_space<vmem>>, %arg4: memref<2x4x256xf32, #tpu.memory_space<vmem>>) attributes {dimension_semantics = [#tpu.dimension_semantics<arbitrary>], iteration_bounds = array<i64: 1>, scalar_prefetch = 0 : i64, scratch_operands = 0 : i64, tpu.core_type = #tpu.core_type<tc>, window_params = [{pipeline_mode = #tpu.pipeline_mode<synchronous>, transform_indices = @transform_0, window_bounds = array<i64: 2, 4, 256>}, {pipeline_mode = #tpu.pipeline_mode<synchronous>, transform_indices = @transform_1, window_bounds = array<i64: 1, 4, 1>}, {pipeline_mode = #tpu.pipeline_mode<synchronous>, transform_indices = @transform_2, window_bounds = array<i64: 1, 4, 1>}, {pipeline_mode = #tpu.pipeline_mode<synchronous>, transform_indices = @transform_3, window_bounds = array<i64: 2, 4, 256>}]} {
    %c0 = arith.constant 0 : index
    %c0_0 = arith.constant 0 : index
    %c0_1 = arith.constant 0 : index
    %0 = vector.load %arg1[%c0, %c0_0, %c0_1] : memref<2x4x256xf32, #tpu.memory_space<vmem>>, vector<2x4x256xf32>
    %cst = arith.constant dense<0.000000e+00> : vector<4x256xf32>
    %1 = vector.multi_reduction <add>, %0, %cst [0] : vector<2x4x256xf32> to vector<4x256xf32>
    %cst_2 = arith.constant dense<0.000000e+00> : vector<4xf32>
    %2 = vector.multi_reduction <add>, %1, %cst_2 [1] : vector<4x256xf32> to vector<4xf32>
    %3 = vector.shape_cast %2 : vector<4xf32> to vector<4x1xf32>
    %cst_3 = arith.constant 0.001953125 : f32
    %4 = vector.broadcast %cst_3 : f32 to vector<4x1xf32>
    %5 = arith.mulf %3, %4 : vector<4x1xf32>
    %6 = vector.shape_cast %5 : vector<4x1xf32> to vector<1x4x1xf32>
    %7 = vector.broadcast %6 : vector<1x4x1xf32> to vector<2x4x256xf32>
    %8 = arith.subf %0, %7 : vector<2x4x256xf32>
    %9 = arith.mulf %8, %8 : vector<2x4x256xf32>
    %cst_4 = arith.constant dense<0.000000e+00> : vector<4x256xf32>
    %10 = vector.multi_reduction <add>, %9, %cst_4 [0] : vector<2x4x256xf32> to vector<4x256xf32>
    %cst_5 = arith.constant dense<0.000000e+00> : vector<4xf32>
    %11 = vector.multi_reduction <add>, %10, %cst_5 [1] : vector<4x256xf32> to vector<4xf32>
    %12 = vector.shape_cast %11 : vector<4xf32> to vector<4x1xf32>
    %cst_6 = arith.constant 0.001953125 : f32
    %13 = vector.broadcast %cst_6 : f32 to vector<4x1xf32>
    %14 = arith.mulf %12, %13 : vector<4x1xf32>
    %cst_7 = arith.constant 9.99999974E-6 : f32
    %15 = vector.broadcast %cst_7 : f32 to vector<4x1xf32>
    %16 = arith.addf %14, %15 : vector<4x1xf32>
    %17 = math.rsqrt %16 : vector<4x1xf32>
    %c0_8 = arith.constant 0 : index
    %c0_9 = arith.constant 0 : index
    %c0_10 = arith.constant 0 : index
    %18 = vector.load %arg2[%c0_8, %c0_9, %c0_10] : memref<1x4x1xf32, #tpu.memory_space<vmem>>, vector<1x4x1xf32>
    %19 = vector.shape_cast %17 : vector<4x1xf32> to vector<1x4x1xf32>
    %20 = arith.mulf %18, %19 : vector<1x4x1xf32>
    %c0_11 = arith.constant 0 : index
    %c0_12 = arith.constant 0 : index
    %c0_13 = arith.constant 0 : index
    %21 = vector.load %arg3[%c0_11, %c0_12, %c0_13] : memref<1x4x1xf32, #tpu.memory_space<vmem>>, vector<1x4x1xf32>
    %22 = vector.shape_cast %5 : vector<4x1xf32> to vector<1x4x1xf32>
    %23 = arith.mulf %22, %20 : vector<1x4x1xf32>
    %24 = arith.subf %21, %23 : vector<1x4x1xf32>
    %25 = vector.broadcast %20 : vector<1x4x1xf32> to vector<2x4x256xf32>
    %26 = arith.mulf %0, %25 : vector<2x4x256xf32>
    %27 = vector.broadcast %24 : vector<1x4x1xf32> to vector<2x4x256xf32>
    %28 = arith.addf %26, %27 : vector<2x4x256xf32>
    %cst_14 = arith.constant 0.000000e+00 : f32
    %29 = vector.broadcast %cst_14 : f32 to vector<2x4x256xf32>
    %30 = arith.maximumf %28, %29 : vector<2x4x256xf32>
    %c0_15 = arith.constant 0 : index
    %c0_16 = arith.constant 0 : index
    %c0_17 = arith.constant 0 : index
    %31 = vector.load %arg4[%c0_15, %c0_16, %c0_17] : memref<2x4x256xf32, #tpu.memory_space<vmem>>, vector<2x4x256xf32>
    tpu.vector_store %arg4[%c0_15, %c0_16, %c0_17], %30 {strides = array<i32>} : memref<2x4x256xf32, #tpu.memory_space<vmem>>, vector<2x4x256xf32>,
    return
  }
  func.func @transform_0(%arg0: i32) -> (i32, i32, i32) {
    %c0_i32 = arith.constant 0 : i32
    %c0_i32_0 = arith.constant 0 : i32
    %c0_i32_1 = arith.constant 0 : i32
    %c0_i32_2 = arith.constant 0 : i32
    return %c0_i32, %c0_i32_0, %c0_i32_1 : i32, i32, i32
  }
  func.func @transform_1(%arg0: i32) -> (i32, i32, i32) {
    %c0_i32 = arith.constant 0 : i32
    %c0_i32_0 = arith.constant 0 : i32
    %c0_i32_1 = arith.constant 0 : i32
    %c0_i32_2 = arith.constant 0 : i32
    return %c0_i32, %c0_i32_0, %c0_i32_1 : i32, i32, i32
  }
  func.func @transform_2(%arg0: i32) -> (i32, i32, i32) {
    %c0_i32 = arith.constant 0 : i32
    %c0_i32_0 = arith.constant 0 : i32
    %c0_i32_1 = arith.constant 0 : i32
    %c0_i32_2 = arith.constant 0 : i32
    return %c0_i32, %c0_i32_0, %c0_i32_1 : i32, i32, i32
  }
  func.func @transform_3(%arg0: i32) -> (i32, i32, i32) {
    %c0_i32 = arith.constant 0 : i32
    %c0_i32_0 = arith.constant 0 : i32
    %c0_i32_1 = arith.constant 0 : i32
    %c0_i32_2 = arith.constant 0 : i32
    return %c0_i32, %c0_i32_0, %c0_i32_1 : i32, i32, i32
  }
}

</mosaic_0001>

<llo_original>
// kernel: tpu_custom_call.1
$region0: #{tpu_custom_call.1}
  #allocation0 [shape = 'u32[]', space=smem, size = 0x4, offset = 0x4, fixed_abs, tag = 'smem constant byte address 0x4 - core index']
  #allocation1 [shape = 'u32[144,128]{1,0:T(1,128)}', space=vmem, size = 0x12000, scoped, tag = 'internal scratch']
  %s0 = inlined_call_operand.hbm [shape: f32[2,4,256], index: 0, kind: input, shape index: {}]
  %s1 = inlined_call_operand.vmem [shape: f32[1,4,1], index: 1, kind: input, shape index: {}]
  %s2 = inlined_call_operand.vmem [shape: f32[1,4,1], index: 2, kind: input, shape index: {}]
  %s3 = inlined_call_operand.hbm [shape: f32[2,4,256], index: 3, kind: output, shape index: {}]
  %s4 = sld [smem:[#allocation0]]
  $region26: #{tpu_custom_call.1} parent=0
    _
  %s6 = ssub.s32 1, %s4
  %s7 = scalar_select 0, %s6, %s4
  $region1: #{tpu_custom_call.1} parent=0
    #allocation2 [shape = 'u8[8192]{0}', space=vmem, size = 0x2000, scoped, tag = 'input window, operand 0, single buffered']
    #allocation3 [shape = 's32[1]{0}', space=sflag, size = 0x4, scoped, tag = 'scoped memory for tpu_custom_call.1']
    #allocation4 [shape = 's32[1]{0}', space=sflag, size = 0x4, scoped, tag = 'scoped memory for tpu_custom_call.1']
    #allocation5 [shape = 'u8[8192]{0}', space=vmem, size = 0x2000, scoped, tag = 'output window, operand 0, single buffered']
    %8 = vsyncpa [#allocation3], 0
    %9 = vsyncpa [#allocation4], 0
    // Predicated region
    $region2: #{tpu_custom_call.1} parent=1 // pred_check
      _
    $region3: #{tpu_custom_call.1} parent=1 // pred_check_branch
      %11 = sbr.rel (0) target = $region5
    $region4: #{tpu_custom_call.1} parent=1 // pred_region
      %s13 = ssub.s32 256, 256
      %14 = vsyncadd [#allocation3], %s13
      %s15 = sshll.u32 [#allocation2], 4
      %s16 = int_to_ptr.vmem [resolvable:$true] %s15
      %21 = dma.hbm_to_vmem [thread:$0]  %s0, 256, %s16, [#allocation3], 128, 128, 8
    $region5: #{tpu_custom_call.1} parent=1 // pred_fallthru
      _
    // Predicated region
    $region6: #{tpu_custom_call.1} parent=1 // pred_check
      _
    $region7: #{tpu_custom_call.1} parent=1 // pred_check_branch
      %23 = sbr.rel (0) target = $region9
    $region8: #{tpu_custom_call.1} parent=1 // pred_region
      _
    $region9: #{tpu_custom_call.1} parent=1 // pred_fallthru
      _
    // Predicated region
    $region10: #{tpu_custom_call.1} parent=1 // pred_check
      _
    $region11: #{tpu_custom_call.1} parent=1 // pred_check_branch
      %25 = sbr.rel (0) target = $region13
    $region12: #{tpu_custom_call.1} parent=1 // pred_region
      _
    $region13: #{tpu_custom_call.1} parent=1 // pred_fallthru
      _
    // Predicated region
    $region14: #{tpu_custom_call.1} parent=1 // pred_check
      _
    $region15: #{tpu_custom_call.1} parent=1 // pred_check_branch
      %27 = sbr.rel (0) target = $region17
    $region16: #{tpu_custom_call.1} parent=1 // pred_region
      %28 = dma.done [#allocation3], 256
    $region17: #{tpu_custom_call.1} parent=1 // pred_fallthru
      _
    %v29 = vld [vmem:[#allocation2] sm:$0xff]
    %v30 = vld [vmem:[#allocation2 + $0x8] sm:$0xff]
    %v33 = vcombine.high %v29, %v29
    %v34 = vcombine.high %v30, %v30
    %vm37 = vcmask 1043456
    %v38 = vsel %vm37, %v29, 0.0
    %v39 = vsel %vm37, %v30, 0.0
    %v40 = vadd.f32 %v38, %v39
    %v41 = vsel %vm37, %v33, 0.0
    %v42 = vsel %vm37, %v34, 0.0
    %v43 = vadd.f32 %v41, %v42
    %v44 = vsel %vm37, %v40, 0.0
    %v45 = vsel %vm37, %v43, 0.0
    %v46 = vadd.f32 %v44, %v45
    %47 = vadd.xlane.f32.xlu0 %v46
    %v48 = vpop.xlane.xlu0 %47
    %v49 = vmul.f32 %v48, 0.001953125
    %v52 = vunpack.c.l.s4 839922192
    %v53 = vunpack.c.0.s8 %v52
    %v54 = vlaneseq
    %v55 = vshrl.u32 %v54, 7
    %v56 = vsub.s32 %v53, %v55
    %v57 = vrot.slane %v49, %v56
    %v59 = vsub.f32 %v29, %v57
    %v60 = vsub.f32 %v30, %v57
    %v61 = vmul.f32 %v59, %v59
    %v62 = vmul.f32 %v60, %v60
    %v65 = vcombine.high %v61, %v61
    %v66 = vcombine.high %v62, %v62
    %v69 = vsel %vm37, %v61, 0.0
    %v70 = vsel %vm37, %v62, 0.0
    %v71 = vadd.f32 %v69, %v70
    %v72 = vsel %vm37, %v65, 0.0
    %v73 = vsel %vm37, %v66, 0.0
    %v74 = vadd.f32 %v72, %v73
    %v75 = vsel %vm37, %v71, 0.0
    %v76 = vsel %vm37, %v74, 0.0
    %v77 = vadd.f32 %v75, %v76
    %78 = vadd.xlane.f32.xlu0 %v77
    %v79 = vpop.xlane.xlu0 %78
    %v80 = vmul.f32 %v79, 0.001953125
    %v81 = vadd.f32 %v80, 1e-05
    %v82 = vrsqrt.pop %v81
    %v83 = vld [vmem:[%s1] sm:$0xf]
    %v84 = vmul.f32 %v83, %v82
    %v85 = vld [vmem:[%s2] sm:$0xf]
    %v86 = vmul.f32 %v49, %v84
    %v87 = vsub.f32 %v85, %v86
    %89 = vset.pattern.permute.xlu0 0
    %90 = vperm.xlu0 %89, %v84
    %v91 = vpop.permute.xlu0 %90
    %v93 = vunpack.c.l.s4 839922192
    %v94 = vunpack.c.0.s8 %v93
    %v95 = vlaneseq
    %v96 = vshrl.u32 %v95, 7
    %v97 = vsub.s32 %v94, %v96
    %v98 = vrot.slane %v91, %v97
    %v100 = vmul.f32 %v29, %v98
    %v101 = vmul.f32 %v30, %v98
    %103 = vset.pattern.permute.xlu0 0
    %104 = vperm.xlu0 %103, %v87
    %v105 = vpop.permute.xlu0 %104
    %v107 = vunpack.c.l.s4 839922192
    %v108 = vunpack.c.0.s8 %v107
    %v109 = vlaneseq
    %v110 = vshrl.u32 %v109, 7
    %v111 = vsub.s32 %v108, %v110
    %v112 = vrot.slane %v105, %v111
    %v114 = vadd.f32 %v100, %v112
    %v115 = vadd.f32 %v101, %v112
    %v116 = vmax.f32 %v114, 0.0
    %v117 = vmax.f32 %v115, 0.0
    %118 = vst [vmem:[#allocation5] sm:$0xff] %v116
    %119 = vst [vmem:[#allocation5 + $0x8] sm:$0xff] %v117
    // Predicated region
    $region18: #{tpu_custom_call.1} parent=1 // pred_check
      _
    $region19: #{tpu_custom_call.1} parent=1 // pred_check_branch
      %121 = sbr.rel (0) target = $region21
    $region20: #{tpu_custom_call.1} parent=1 // pred_region
      %s123 = ssub.s32 256, 256
      %124 = vsyncadd [#allocation4], %s123
      %s125 = sshll.u32 [#allocation5], 4
      %s126 = int_to_ptr.vmem [resolvable:$true] %s125
      %131 = dma.vmem_to_hbm [thread:$0]  %s126, 256, %s3, [#allocation4], 128, 128, 8
    $region21: #{tpu_custom_call.1} parent=1 // pred_fallthru
      _
    // Predicated region
    $region22: #{tpu_custom_call.1} parent=1 // pred_check
      _
    $region23: #{tpu_custom_call.1} parent=1 // pred_check_branch
      %133 = sbr.rel (0) target = $region25
    $region24: #{tpu_custom_call.1} parent=1 // pred_region
      %134 = dma.done [#allocation4], 256
    $region25: #{tpu_custom_call.1} parent=1 // pred_fallthru
      _
    %135 = vsyncpa [#allocation3], 1
    %136 = vsyncpa [#allocation4], 1

</llo_original>
